<compile_context>
chip_gen: v6e
topology: v6e:2x2x1
jax: 0.10.0
libtpu: 0.0.40
codegen_flags: <defaults>
</compile_context>

<pallas_src>
import functools
import math

import jax
import jax.numpy as jnp
from jax.experimental import pallas as pl
from jax.experimental.pallas import tpu as pltpu

LOG_STD_MIN = -20.0
LOG_STD_MAX = 2.0
_HALF_LOG_2PI = 0.5 * math.log(2.0 * math.pi)
_LOG_2 = math.log(2.0)
_LANES = 128          # lane-dense packed parameter width
_MAX_TILE_B = 1024    # batch tile for large batches


def _round_up(x, m):
    return ((x + m - 1) // m) * m


def _packed_layout(S, H1, H2, A):
    """Row offsets of each parameter segment inside the packed buffer.

    Every segment is lane-padded to 128 columns.  W2 and the fused head
    weight additionally get their K (row) dimension zero-padded to 128 so the
    kernel can run full 128x128 lane-dense matmuls with no masked slices.
    """
    assert H1 <= _LANES and H2 <= _LANES and 2 * A <= _LANES
    rows = {
        "w1": _round_up(S, 8),
        "b1": 8,
        "w2": _LANES,   # K padded to the full 128 lanes of h1
        "b2": 8,
        "wh": _LANES,   # K padded to the full 128 lanes of h2
        "bh": 8,
    }
    offs, r = {}, 0
    for name in ("w1", "b1", "w2", "b2", "wh", "bh"):
        offs[name] = r
        r += rows[name]
    return offs, r


def pack_params(params):
    """Pack all weights/biases into one (rows, 128) f32 buffer.

    Done ONCE at parameter-update time (not per forward call).  The mu and
    log_std heads are pre-concatenated into a single (H2, 2A) weight so the
    kernel runs one fused head matmul.
    """
    S, H1 = params["w1"].shape
    H2 = params["w2"].shape[1]
    A = params["wmu"].shape[1]
    offs, total_rows = _packed_layout(S, H1, H2, A)

    buf = jnp.zeros((total_rows, _LANES), jnp.float32)

    def put(b, name, m):
        m = m.astype(jnp.float32)
        return b.at[offs[name]:offs[name] + m.shape[0], :m.shape[1]].set(m)

    buf = put(buf, "w1", params["w1"])
    buf = put(buf, "b1", params["b1"])
    buf = put(buf, "w2", params["w2"])
    buf = put(buf, "b2", params["b2"])
    buf = put(buf, "wh", jnp.concatenate([params["wmu"], params["wls"]], axis=1))
    buf = put(buf, "bh", jnp.concatenate([params["bmu"], params["bls"]], axis=1))
    return buf


def _actor_kernel(state_ref, params_ref, eps_ref, a_ref, logp_ref, *, dims, offs):
    S, H1, H2, A = dims

    x = state_ref[...]                                               # (TB, S)

    # layer 1: (TB,S)@(S,128); zero-padded columns stay exactly 0 through ReLU
    w1 = params_ref[offs["w1"]:offs["w1"] + S, :]
    b1 = params_ref[offs["b1"]:offs["b1"] + 1, :]
    h1 = jnp.maximum(jnp.dot(x, w1, preferred_element_type=jnp.float32) + b1, 0.0)

    # layer 2: full lane-dense 128x128 matmul (rows beyond H1 are zero)
    w2 = params_ref[offs["w2"]:offs["w2"] + _LANES, :]
    b2 = params_ref[offs["b2"]:offs["b2"] + 1, :]
    h2 = jnp.maximum(jnp.dot(h1, w2, preferred_element_type=jnp.float32) + b2, 0.0)

    # fused mu / log_std head: one 128x128 matmul, then lane split on the value
    wh = params_ref[offs["wh"]:offs["wh"] + _LANES, :]
    bh = params_ref[offs["bh"]:offs["bh"] + 1, :]
    head = jnp.dot(h2, wh, preferred_element_type=jnp.float32) + bh  # (TB, 128)

    mu = head[:, :A]
    log_std = jnp.clip(head[:, A:2 * A], LOG_STD_MIN, LOG_STD_MAX)
    std = jnp.exp(log_std)

    # reparameterized sample with externally supplied noise
    eps = eps_ref[...]                                               # (TB, A)
    u = mu + std * eps
    a = jnp.tanh(u)

    # Normal(mu, std).log_prob(u) = -0.5*eps^2 - log_std - 0.5*log(2*pi)
    log_prob = -0.5 * eps * eps - log_std - _HALF_LOG_2PI
    # tanh squash correction, numerically stable softplus(-2u)
    x2 = -2.0 * u
    softplus = jnp.maximum(x2, 0.0) + jnp.log1p(jnp.exp(-jnp.abs(x2)))
    corr = 2.0 * (_LOG_2 - u - softplus)

    # single fused cross-lane reduction
    logp = jnp.sum(log_prob - corr, axis=1, keepdims=True)           # (TB, 1)

    # minimal, fully-written output blocks (no padding / stale lanes stored)
    a_ref[...] = a
    logp_ref[...] = logp


@functools.partial(jax.jit, static_argnames=("dims",))
def actor_bs_forward(state, packed, eps, *, dims):
    """Full Actor_BS forward in one pallas_call; returns (a, logp_pi_a)."""
    S, H1, H2, A = dims
    offs, _ = _packed_layout(S, H1, H2, A)

    B = state.shape[0]
    rb = _round_up(B, 8)
    # >= 2 grid steps when possible (v7x megacore splits the "parallel" axis),
    # cap tile at _MAX_TILE_B, keep padding waste <= 8 rows per grid step.
    n_tiles = max(-(-rb // _MAX_TILE_B), 2 if rb >= 16 else 1)
    tile_b = _round_up(-(-rb // n_tiles), 8)
    padded_b = n_tiles * tile_b
    if padded_b != B:
        state = jnp.pad(state, ((0, padded_b - B), (0, 0)))
        eps = jnp.pad(eps, ((0, padded_b - B), (0, 0)))

    kernel = functools.partial(_actor_kernel, dims=dims, offs=offs)

    a_out, logp_out = pl.pallas_call(
        kernel,
        out_shape=(jax.ShapeDtypeStruct((padded_b, A), jnp.float32),
                   jax.ShapeDtypeStruct((padded_b, 1), jnp.float32)),
        grid_spec=pltpu.PrefetchScalarGridSpec(
            num_scalar_prefetch=0,
            grid=(n_tiles,),
            in_specs=[
                pl.BlockSpec((tile_b, S), lambda i: (i, 0)),      # state tile
                pl.BlockSpec(packed.shape, lambda i: (0, 0)),     # weights resident
                pl.BlockSpec((tile_b, A), lambda i: (i, 0)),      # eps tile
            ],
            out_specs=[
                pl.BlockSpec((tile_b, A), lambda i: (i, 0)),      # a
                pl.BlockSpec((tile_b, 1), lambda i: (i, 0)),      # logp
            ],
        ),
        compiler_params=pltpu.CompilerParams(
            dimension_semantics=("parallel",),
            vmem_limit_bytes=32 * 1024 * 1024),
    )(state, packed, eps)

    return a_out[:B], logp_out[:B]


def actor_bs_reference(state, params, eps):
    """Pure-JAX reference matching the PyTorch forward."""
    h1 = jax.nn.relu(state @ params["w1"] + params["b1"])
    h2 = jax.nn.relu(h1 @ params["w2"] + params["b2"])
    mu = h2 @ params["wmu"] + params["bmu"]
    log_std = jnp.clip(h2 @ params["wls"] + params["bls"], LOG_STD_MIN, LOG_STD_MAX)
    std = jnp.exp(log_std)
    u = mu + std * eps
    a = jnp.tanh(u)
    log_prob = -0.5 * eps * eps - log_std - _HALF_LOG_2PI
    corr = 2.0 * (_LOG_2 - u - jax.nn.softplus(-2.0 * u))
    logp = jnp.sum(log_prob - corr, axis=1, keepdims=True)
    return a, logp


def init_params(key, state_dim, hid_shape, action_dim):
    """Deterministic synthetic init (PyTorch-Linear-like uniform fan-in scaling)."""
    dims = [state_dim] + list(hid_shape)
    params = {}
    keys = jax.random.split(key, 8)

    def linear(kw, kb, fan_in, fan_out):
        bound = 1.0 / math.sqrt(fan_in)
        w = jax.random.uniform(kw, (fan_in, fan_out), jnp.float32, -bound, bound)
        b = jax.random.uniform(kb, (1, fan_out), jnp.float32, -bound, bound)
        return w, b

    params["w1"], params["b1"] = linear(keys[0], keys[1], dims[0], dims[1])
    params["w2"], params["b2"] = linear(keys[2], keys[3], dims[1], dims[2])
    params["wmu"], params["bmu"] = linear(keys[4], keys[5], dims[2], action_dim)
    params["wls"], params["bls"] = linear(keys[6], keys[7], dims[2], action_dim)
    return params


if __name__ == "__main__":
    state_dim_BS = 16
    action_dim_BS = 4
    hid_shape = (32, 32)
    batch = 8

    root = jax.random.PRNGKey(0)
    k_params, k_state, k_eps = jax.random.split(root, 3)

    params = init_params(k_params, state_dim_BS, hid_shape, action_dim_BS)
    state = jax.random.normal(k_state, (batch, state_dim_BS), jnp.float32)
    # rsample noise (fixed so the kernel is deterministic end-to-end)
    # TODO(synk): Normal.rsample's internal RNG has no in-kernel equivalent here;
    # noise is supplied externally.
    eps = jax.random.normal(k_eps, (batch, action_dim_BS), jnp.float32)

    # Pack once at parameter-update time (hoisted out of the forward path).
    packed = pack_params(params)
    dims = (state_dim_BS, hid_shape[0], hid_shape[1], action_dim_BS)

    a, logp_pi_a = actor_bs_forward(state, packed, eps, dims=dims)
    jax.block_until_ready((a, logp_pi_a))

    a_ref, logp_ref = actor_bs_reference(state, params, eps)

    assert a.shape == (batch, action_dim_BS)
    assert logp_pi_a.shape == (batch, 1)
    assert bool(jnp.all(jnp.isfinite(a))) and bool(jnp.all(jnp.isfinite(logp_pi_a)))
    assert bool(jnp.allclose(a, a_ref, rtol=1e-3, atol=1e-3))
    assert bool(jnp.allclose(logp_pi_a, logp_ref, rtol=1e-3, atol=1e-3))
    print("KERNEL_OK")
</pallas_src>

<mosaic_0001>
module attributes {stable_mosaic.version = 11 : i64} {
  func.func @_actor_kernel(%arg0: i32, %arg1: memref<8x16xf32, #tpu.memory_space<vmem>>, %arg2: memref<296x128xf32, #tpu.memory_space<vmem>>, %arg3: memref<8x4xf32, #tpu.memory_space<vmem>>, %arg4: memref<8x4xf32, #tpu.memory_space<vmem>>, %arg5: memref<8x1xf32, #tpu.memory_space<vmem>>) attributes {dimension_semantics = [#tpu.dimension_semantics<parallel>], iteration_bounds = array<i64: 1>, scalar_prefetch = 0 : i64, scratch_operands = 0 : i64, tpu.core_type = #tpu.core_type<tc>, window_params = [{transform_indices = @transform_0, window_bounds = array<i64: 8, 16>}, {pipeline_mode = #tpu.pipeline_mode<synchronous>, transform_indices = @transform_1, window_bounds = array<i64: 296, 128>}, {transform_indices = @transform_2, window_bounds = array<i64: 8, 4>}, {transform_indices = @transform_3, window_bounds = array<i64: 8, 4>}, {transform_indices = @transform_4, window_bounds = array<i64: 8, 1>}]} {
    %c0 = arith.constant 0 : index
    %c0_0 = arith.constant 0 : index
    %0 = vector.load %arg1[%c0, %c0_0] : memref<8x16xf32, #tpu.memory_space<vmem>>, vector<8x16xf32>
    %c0_1 = arith.constant 0 : index
    %c0_2 = arith.constant 0 : index
    %1 = vector.load %arg2[%c0_1, %c0_2] : memref<296x128xf32, #tpu.memory_space<vmem>>, vector<16x128xf32>
    %c16 = arith.constant 16 : index
    %c0_3 = arith.constant 0 : index
    %2 = vector.load %arg2[%c16, %c0_3] : memref<296x128xf32, #tpu.memory_space<vmem>>, vector<1x128xf32>
    %cst = arith.constant dense<0.000000e+00> : vector<8x128xf32>
    %3 = tpu.matmul %0, %1, %cst {dimension_numbers = #tpu.dot_dimension_numbers<[1], [0], [0], [1], [0, 0, 1, 1], [], []>} : vector<8x16xf32>, vector<16x128xf32>, vector<8x128xf32> -> vector<8x128xf32>
    %4 = vector.broadcast %2 : vector<1x128xf32> to vector<8x128xf32>
    %5 = arith.addf %3, %4 : vector<8x128xf32>
    %cst_4 = arith.constant 0.000000e+00 : f32
    %6 = vector.broadcast %cst_4 : f32 to vector<8x128xf32>
    %7 = arith.maximumf %5, %6 : vector<8x128xf32>
    %c24 = arith.constant 24 : index
    %c0_5 = arith.constant 0 : index
    %8 = vector.load %arg2[%c24, %c0_5] : memref<296x128xf32, #tpu.memory_space<vmem>>, vector<128x128xf32>
    %c152 = arith.constant 152 : index
    %c0_6 = arith.constant 0 : index
    %9 = vector.load %arg2[%c152, %c0_6] : memref<296x128xf32, #tpu.memory_space<vmem>>, vector<1x128xf32>
    %cst_7 = arith.constant dense<0.000000e+00> : vector<8x128xf32>
    %10 = tpu.matmul %7, %8, %cst_7 {dimension_numbers = #tpu.dot_dimension_numbers<[1], [0], [0], [1], [0, 0, 1, 1], [], []>} : vector<8x128xf32>, vector<128x128xf32>, vector<8x128xf32> -> vector<8x128xf32>
    %11 = vector.broadcast %9 : vector<1x128xf32> to vector<8x128xf32>
    %12 = arith.addf %10, %11 : vector<8x128xf32>
    %cst_8 = arith.constant 0.000000e+00 : f32
    %13 = vector.broadcast %cst_8 : f32 to vector<8x128xf32>
    %14 = arith.maximumf %12, %13 : vector<8x128xf32>
    %c160 = arith.constant 160 : index
    %c0_9 = arith.constant 0 : index
    %15 = vector.load %arg2[%c160, %c0_9] : memref<296x128xf32, #tpu.memory_space<vmem>>, vector<128x128xf32>
    %c288 = arith.constant 288 : index
    %c0_10 = arith.constant 0 : index
    %16 = vector.load %arg2[%c288, %c0_10] : memref<296x128xf32, #tpu.memory_space<vmem>>, vector<1x128xf32>
    %cst_11 = arith.constant dense<0.000000e+00> : vector<8x128xf32>
    %17 = tpu.matmul %14, %15, %cst_11 {dimension_numbers = #tpu.dot_dimension_numbers<[1], [0], [0], [1], [0, 0, 1, 1], [], []>} : vector<8x128xf32>, vector<128x128xf32>, vector<8x128xf32> -> vector<8x128xf32>
    %18 = vector.broadcast %16 : vector<1x128xf32> to vector<8x128xf32>
    %19 = arith.addf %17, %18 : vector<8x128xf32>
    %20 = vector.extract_strided_slice %19 {offsets = [0, 0], sizes = [8, 4], strides = [1, 1]} : vector<8x128xf32> to vector<8x4xf32>
    %21 = vector.extract_strided_slice %19 {offsets = [0, 4], sizes = [8, 4], strides = [1, 1]} : vector<8x128xf32> to vector<8x4xf32>
    %cst_12 = arith.constant -2.000000e+01 : f32
    %cst_13 = arith.constant 2.000000e+00 : f32
    %22 = vector.broadcast %cst_12 : f32 to vector<8x4xf32>
    %23 = arith.maximumf %22, %21 : vector<8x4xf32>
    %24 = vector.broadcast %cst_13 : f32 to vector<8x4xf32>
    %25 = arith.minimumf %24, %23 : vector<8x4xf32>
    %26 = math.exp %25 : vector<8x4xf32>
    %c0_14 = arith.constant 0 : index
    %c0_15 = arith.constant 0 : index
    %27 = vector.load %arg3[%c0_14, %c0_15] : memref<8x4xf32, #tpu.memory_space<vmem>>, vector<8x4xf32>
    %28 = arith.mulf %26, %27 : vector<8x4xf32>
    %29 = arith.addf %20, %28 : vector<8x4xf32>
    %30 = math.tanh %29 : vector<8x4xf32>
    %cst_16 = arith.constant -5.000000e-01 : f32
    %31 = vector.broadcast %cst_16 : f32 to vector<8x4xf32>
    %32 = arith.mulf %31, %27 : vector<8x4xf32>
    %33 = arith.mulf %32, %27 : vector<8x4xf32>
    %34 = arith.subf %33, %25 : vector<8x4xf32>
    %cst_17 = arith.constant 0.918938517 : f32
    %35 = vector.broadcast %cst_17 : f32 to vector<8x4xf32>
    %36 = arith.subf %34, %35 : vector<8x4xf32>
    %cst_18 = arith.constant -2.000000e+00 : f32
    %37 = vector.broadcast %cst_18 : f32 to vector<8x4xf32>
    %38 = arith.mulf %37, %29 : vector<8x4xf32>
    %cst_19 = arith.constant 0.000000e+00 : f32
    %39 = vector.broadcast %cst_19 : f32 to vector<8x4xf32>
    %40 = arith.maximumf %38, %39 : vector<8x4xf32>
    %41 = math.absf %38 : vector<8x4xf32>
    %cst_20 = arith.constant 0.000000e+00 : f32
    %42 = vector.broadcast %cst_20 : f32 to vector<8x4xf32>
    %43 = arith.subf %42, %41 : vector<8x4xf32>
    %44 = math.exp %43 : vector<8x4xf32>
    %45 = math.log1p %44 : vector<8x4xf32>
    %46 = arith.addf %40, %45 : vector<8x4xf32>
    %cst_21 = arith.constant 0.693147182 : f32
    %47 = vector.broadcast %cst_21 : f32 to vector<8x4xf32>
    %48 = arith.subf %47, %29 : vector<8x4xf32>
    %49 = arith.subf %48, %46 : vector<8x4xf32>
    %cst_22 = arith.constant 2.000000e+00 : f32
    %50 = vector.broadcast %cst_22 : f32 to vector<8x4xf32>
    %51 = arith.mulf %50, %49 : vector<8x4xf32>
    %52 = arith.subf %36, %51 : vector<8x4xf32>
    %cst_23 = arith.constant dense<0.000000e+00> : vector<8xf32>
    %53 = vector.multi_reduction <add>, %52, %cst_23 [1] : vector<8x4xf32> to vector<8xf32>
    %54 = vector.shape_cast %53 : vector<8xf32> to vector<8x1xf32>
    %c0_24 = arith.constant 0 : index
    %c0_25 = arith.constant 0 : index
    %55 = vector.load %arg4[%c0_24, %c0_25] : memref<8x4xf32, #tpu.memory_space<vmem>>, vector<8x4xf32>
    tpu.vector_store %arg4[%c0_24, %c0_25], %30 {strides = array<i32>} : memref<8x4xf32, #tpu.memory_space<vmem>>, vector<8x4xf32>,
    %c0_26 = arith.constant 0 : index
    %c0_27 = arith.constant 0 : index
    %56 = vector.load %arg5[%c0_26, %c0_27] : memref<8x1xf32, #tpu.memory_space<vmem>>, vector<8x1xf32>
    tpu.vector_store %arg5[%c0_26, %c0_27], %54 {strides = array<i32>} : memref<8x1xf32, #tpu.memory_space<vmem>>, vector<8x1xf32>,
    return
  }
  func.func @transform_0(%arg0: i32) -> (i32, i32) {
    %c0_i32 = arith.constant 0 : i32
    %c0_i32_0 = arith.constant 0 : i32
    return %arg0, %c0_i32 : i32, i32
  }
  func.func @transform_1(%arg0: i32) -> (i32, i32) {
    %c0_i32 = arith.constant 0 : i32
    %c0_i32_0 = arith.constant 0 : i32
    %c0_i32_1 = arith.constant 0 : i32
    return %c0_i32, %c0_i32_0 : i32, i32
  }
  func.func @transform_2(%arg0: i32) -> (i32, i32) {
    %c0_i32 = arith.constant 0 : i32
    %c0_i32_0 = arith.constant 0 : i32
    return %arg0, %c0_i32 : i32, i32
  }
  func.func @transform_3(%arg0: i32) -> (i32, i32) {
    %c0_i32 = arith.constant 0 : i32
    %c0_i32_0 = arith.constant 0 : i32
    return %arg0, %c0_i32 : i32, i32
  }
  func.func @transform_4(%arg0: i32) -> (i32, i32) {
    %c0_i32 = arith.constant 0 : i32
    %c0_i32_0 = arith.constant 0 : i32
    return %arg0, %c0_i32 : i32, i32
  }
}

</mosaic_0001>

<llo_original>
// kernel: actor_bs_forward.1
$region0: #{actor_bs_forward.1}
  #allocation0 [shape = 'u32[]', space=smem, size = 0x4, offset = 0x4, fixed_abs, tag = 'smem constant byte address 0x4 - core index']
  #allocation1 [shape = 'u32[144,128]{1,0:T(1,128)}', space=vmem, size = 0x12000, scoped, tag = 'internal scratch']
  %s0 = inlined_call_operand.vmem [shape: f32[8,16], index: 0, kind: input, shape index: {}]
  %s1 = inlined_call_operand.hbm [shape: f32[296,128], index: 1, kind: input, shape index: {}]
  %s2 = inlined_call_operand.vmem [shape: f32[8,4], index: 2, kind: input, shape index: {}]
  %s3 = inlined_call_operand.vmem [shape: f32[8,4], index: 3, kind: output, shape index: {0}]
  %s4 = inlined_call_operand.vmem [shape: f32[8,1], index: 4, kind: output, shape index: {1}]
  %5 = xla_tuple %s3, %s4
  %s6 = sld [smem:[#allocation0]]
  $region34: #{actor_bs_forward.1} parent=0
    _
  %s8 = ssub.s32 1, %s6
  %s9 = scalar_select 0, %s8, %s6
  $region1: #{actor_bs_forward.1} parent=0
    #allocation2 [shape = 'u8[151552]{0}', space=vmem, size = 0x25000, scoped, tag = 'input window, operand 1, single buffered']
    #allocation3 [shape = 's32[1]{0}', space=sflag, size = 0x4, scoped, tag = 'scoped memory for actor_bs_forward.1']
    %10 = vsyncpa [#allocation3], 0
    // Predicated region
    $region2: #{actor_bs_forward.1} parent=1 // pred_check
      _
    $region3: #{actor_bs_forward.1} parent=1 // pred_check_branch
      %12 = sbr.rel (0) target = $region5
    $region4: #{actor_bs_forward.1} parent=1 // pred_region
      _
    $region5: #{actor_bs_forward.1} parent=1 // pred_fallthru
      _
    // Predicated region
    $region6: #{actor_bs_forward.1} parent=1 // pred_check
      _
    $region7: #{actor_bs_forward.1} parent=1 // pred_check_branch
      %14 = sbr.rel (0) target = $region9
    $region8: #{actor_bs_forward.1} parent=1 // pred_region
      %s16 = ssub.s32 4736, 4736
      %17 = vsyncadd [#allocation3], %s16
      %s18 = sshll.u32 [#allocation2], 4
      %s19 = int_to_ptr.vmem [resolvable:$true] %s18
      %24 = dma.hbm_to_vmem [thread:$0]  %s1, 4736, %s19, [#allocation3], 128, 128, 8
    $region9: #{actor_bs_forward.1} parent=1 // pred_fallthru
      _
    // Predicated region
    $region10: #{actor_bs_forward.1} parent=1 // pred_check
      _
    $region11: #{actor_bs_forward.1} parent=1 // pred_check_branch
      %26 = sbr.rel (0) target = $region13
    $region12: #{actor_bs_forward.1} parent=1 // pred_region
      _
    $region13: #{actor_bs_forward.1} parent=1 // pred_fallthru
      _
    // Predicated region
    $region14: #{actor_bs_forward.1} parent=1 // pred_check
      _
    $region15: #{actor_bs_forward.1} parent=1 // pred_check_branch
      %28 = sbr.rel (0) target = $region17
    $region16: #{actor_bs_forward.1} parent=1 // pred_region
      %29 = dma.done [#allocation3], 4736
    $region17: #{actor_bs_forward.1} parent=1 // pred_fallthru
      _
    %v30 = vld [vmem:[%s0] sm:$0xff]
    %v31 = vld [vmem:[#allocation2] sm:$0xff]
    %v32 = vld [vmem:[#allocation2 + $0x8] sm:$0xff]
    %v33 = vld [vmem:[#allocation2 + $0x10] sm:$0x1]
    %v34 = vlaneseq
    %v35 = vshrl.u32 %v34, 7
    %v36 = vsub.s32 0, %v35
    %v37 = vrot.slane %v33, %v36
    %vm38 = vcmask 130048
    %v40 = vsel %vm38, %v30, 0
    %42 = vmatprep.subr.mxu0 0.0
    %43 = vmatpush1.msra.mxu0 0.0
    %44 = vmatprep.subr.mxu0 0.0
    %45 = vmatpush1.msra.mxu0 0.0
    %46 = vmatprep.subr.mxu0 0.0
    %47 = vmatpush1.msra.mxu0 0.0
    %48 = vmatprep.subr.mxu0 0.0
    %49 = vmatpush1.msra.mxu0 0.0
    %50 = vmatprep.subr.mxu0 0.0
    %51 = vmatpush1.msra.mxu0 0.0
    %52 = vmatprep.subr.mxu0 0.0
    %53 = vmatpush1.msra.mxu0 0.0
    %54 = vmatprep.subr.mxu0 0.0
    %55 = vmatpush1.msra.mxu0 0.0
    %56 = vmatprep.subr.mxu0 0.0
    %57 = vmatpush1.msra.mxu0 0.0
    %58 = vmatprep.subr.mxu0 0.0
    %59 = vmatpush1.msra.mxu0 0.0
    %60 = vmatprep.subr.mxu0 0.0
    %61 = vmatpush1.msra.mxu0 0.0
    %62 = vmatprep.subr.mxu0 0.0
    %63 = vmatpush1.msra.mxu0 0.0
    %64 = vmatprep.subr.mxu0 0.0
    %65 = vmatpush1.msra.mxu0 0.0
    %66 = vmatprep.subr.mxu0 0.0
    %67 = vmatpush1.msra.mxu0 0.0
    %68 = vmatprep.subr.mxu0 0.0
    %69 = vmatpush1.msra.mxu0 0.0
    %70 = vmatprep.subr.mxu0 0.0
    %71 = vmatpush1.msra.mxu0 %v32
    %72 = vmatprep.subr.mxu0 0.0
    %73 = vmatpush1.msra.mxu0 %v31
    %74 = vmatprep.subr.mxu0 0.0
    %75 = vmatpush2.msra.mxu0 0.0
    %76 = vmatprep.subr.mxu0 0.0
    %77 = vmatpush2.msra.mxu0 0.0
    %78 = vmatprep.subr.mxu0 0.0
    %79 = vmatpush2.msra.mxu0 0.0
    %80 = vmatprep.subr.mxu0 0.0
    %81 = vmatpush2.msra.mxu0 0.0
    %82 = vmatprep.subr.mxu0 0.0
    %83 = vmatpush2.msra.mxu0 0.0
    %84 = vmatprep.subr.mxu0 0.0
    %85 = vmatpush2.msra.mxu0 0.0
    %86 = vmatprep.subr.mxu0 0.0
    %87 = vmatpush2.msra.mxu0 0.0
    %88 = vmatprep.subr.mxu0 0.0
    %89 = vmatpush2.msra.mxu0 0.0
    %90 = vmatprep.subr.mxu0 0.0
    %91 = vmatpush2.msra.mxu0 0.0
    %92 = vmatprep.subr.mxu0 0.0
    %93 = vmatpush2.msra.mxu0 0.0
    %94 = vmatprep.subr.mxu0 0.0
    %95 = vmatpush2.msra.mxu0 0.0
    %96 = vmatprep.subr.mxu0 0.0
    %97 = vmatpush2.msra.mxu0 0.0
    %98 = vmatprep.subr.mxu0 0.0
    %99 = vmatpush2.msra.mxu0 0.0
    %100 = vmatprep.subr.mxu0 0.0
    %101 = vmatpush2.msra.mxu0 0.0
    %102 = vmatprep.subr.mxu0 0.0
    %103 = vmatpush2.msra.mxu0 0.0
    %104 = vmatprep.subr.mxu0 0.0
    %105 = vmatpush2.msra.mxu0 0.0
    %106 = vmatprep.mubr.f32.mxu0 0.0
    %107 = vmatmul.mubr.f32.gmra.mxu0 %v40
    %v108 = vpop.f32.mrf.mxu0
    %v109 = vadd.f32 %v37, %v108
    %v110 = vpop.f32.mrf.mxu0
    %111 = vdwg.mxu0
    %v112 = vmax.f32 %v109, 0.0
    %v113 = vld [vmem:[#allocation2 + $0x18] sm:$0xff]
    %v114 = vld [vmem:[#allocation2 + $0x20] sm:$0xff]
    %v115 = vld [vmem:[#allocation2 + $0x28] sm:$0xff]
    %v116 = vld [vmem:[#allocation2 + $0x30] sm:$0xff]
    %v117 = vld [vmem:[#allocation2 + $0x38] sm:$0xff]
    %v118 = vld [vmem:[#allocation2 + $0x40] sm:$0xff]
    %v119 = vld [vmem:[#allocation2 + $0x48] sm:$0xff]
    %v120 = vld [vmem:[#allocation2 + $0x50] sm:$0xff]
    %v121 = vld [vmem:[#allocation2 + $0x58] sm:$0xff]
    %v122 = vld [vmem:[#allocation2 + $0x60] sm:$0xff]
    %v123 = vld [vmem:[#allocation2 + $0x68] sm:$0xff]
    %v124 = vld [vmem:[#allocation2 + $0x70] sm:$0xff]
    %v125 = vld [vmem:[#allocation2 + $0x78] sm:$0xff]
    %v126 = vld [vmem:[#allocation2 + $0x80] sm:$0xff]
    %v127 = vld [vmem:[#allocation2 + $0x88] sm:$0xff]
    %v128 = vld [vmem:[#allocation2 + $0x90] sm:$0xff]
    %v129 = vld [vmem:[#allocation2 + $0x98] sm:$0x1]
    %v130 = vlaneseq
    %v131 = vshrl.u32 %v130, 7
    %v132 = vsub.s32 0, %v131
    %v133 = vrot.slane %v129, %v132
    %134 = vmatprep.subr.mxu0 0.0
    %135 = vmatpush1.msra.mxu0 %v128
    %136 = vmatprep.subr.mxu0 0.0
    %137 = vmatpush1.msra.mxu0 %v127
    %138 = vmatprep.subr.mxu0 0.0
    %139 = vmatpush1.msra.mxu0 %v126
    %140 = vmatprep.subr.mxu0 0.0
    %141 = vmatpush1.msra.mxu0 %v125
    %142 = vmatprep.subr.mxu0 0.0
    %143 = vmatpush1.msra.mxu0 %v124
    %144 = vmatprep.subr.mxu0 0.0
    %145 = vmatpush1.msra.mxu0 %v123
    %146 = vmatprep.subr.mxu0 0.0
    %147 = vmatpush1.msra.mxu0 %v122
    %148 = vmatprep.subr.mxu0 0.0
    %149 = vmatpush1.msra.mxu0 %v121
    %150 = vmatprep.subr.mxu0 0.0
    %151 = vmatpush1.msra.mxu0 %v120
    %152 = vmatprep.subr.mxu0 0.0
    %153 = vmatpush1.msra.mxu0 %v119
    %154 = vmatprep.subr.mxu0 0.0
    %155 = vmatpush1.msra.mxu0 %v118
    %156 = vmatprep.subr.mxu0 0.0
    %157 = vmatpush1.msra.mxu0 %v117
    %158 = vmatprep.subr.mxu0 0.0
    %159 = vmatpush1.msra.mxu0 %v116
    %160 = vmatprep.subr.mxu0 0.0
    %161 = vmatpush1.msra.mxu0 %v115
    %162 = vmatprep.subr.mxu0 0.0
    %163 = vmatpush1.msra.mxu0 %v114
    %164 = vmatprep.subr.mxu0 0.0
    %165 = vmatpush1.msra.mxu0 %v113
    %166 = vmatprep.subr.mxu0 0.0
    %167 = vmatpush2.msra.mxu0 0.0
    %168 = vmatprep.subr.mxu0 0.0
    %169 = vmatpush2.msra.mxu0 0.0
    %170 = vmatprep.subr.mxu0 0.0
    %171 = vmatpush2.msra.mxu0 0.0
    %172 = vmatprep.subr.mxu0 0.0
    %173 = vmatpush2.msra.mxu0 0.0
    %174 = vmatprep.subr.mxu0 0.0
    %175 = vmatpush2.msra.mxu0 0.0
    %176 = vmatprep.subr.mxu0 0.0
    %177 = vmatpush2.msra.mxu0 0.0
    %178 = vmatprep.subr.mxu0 0.0
    %179 = vmatpush2.msra.mxu0 0.0
    %180 = vmatprep.subr.mxu0 0.0
    %181 = vmatpush2.msra.mxu0 0.0
    %182 = vmatprep.subr.mxu0 0.0
    %183 = vmatpush2.msra.mxu0 0.0
    %184 = vmatprep.subr.mxu0 0.0
    %185 = vmatpush2.msra.mxu0 0.0
    %186 = vmatprep.subr.mxu0 0.0
    %187 = vmatpush2.msra.mxu0 0.0
    %188 = vmatprep.subr.mxu0 0.0
    %189 = vmatpush2.msra.mxu0 0.0
    %190 = vmatprep.subr.mxu0 0.0
    %191 = vmatpush2.msra.mxu0 0.0
    %192 = vmatprep.subr.mxu0 0.0
    %193 = vmatpush2.msra.mxu0 0.0
    %194 = vmatprep.subr.mxu0 0.0
    %195 = vmatpush2.msra.mxu0 0.0
    %196 = vmatprep.subr.mxu0 0.0
    %197 = vmatpush2.msra.mxu0 0.0
    %198 = vmatprep.mubr.f32.mxu0 0.0
    %199 = vmatmul.mubr.f32.gmra.mxu0 %v112
    %v200 = vpop.f32.mrf.mxu0
    %v201 = vadd.f32 %v133, %v200
    %v202 = vpop.f32.mrf.mxu0
    %203 = vdwg.mxu0
    %v204 = vmax.f32 %v201, 0.0
    %v205 = vld [vmem:[#allocation2 + $0xa0] sm:$0xff]
    %v206 = vld [vmem:[#allocation2 + $0xa8] sm:$0xff]
    %v207 = vld [vmem:[#allocation2 + $0xb0] sm:$0xff]
    %v208 = vld [vmem:[#allocation2 + $0xb8] sm:$0xff]
    %v209 = vld [vmem:[#allocation2 + $0xc0] sm:$0xff]
    %v210 = vld [vmem:[#allocation2 + $0xc8] sm:$0xff]
    %v211 = vld [vmem:[#allocation2 + $0xd0] sm:$0xff]
    %v212 = vld [vmem:[#allocation2 + $0xd8] sm:$0xff]
    %v213 = vld [vmem:[#allocation2 + $0xe0] sm:$0xff]
    %v214 = vld [vmem:[#allocation2 + $0xe8] sm:$0xff]
    %v215 = vld [vmem:[#allocation2 + $0xf0] sm:$0xff]
    %v216 = vld [vmem:[#allocation2 + $0xf8] sm:$0xff]
    %v217 = vld [vmem:[#allocation2 + $0x100] sm:$0xff]
    %v218 = vld [vmem:[#allocation2 + $0x108] sm:$0xff]
    %v219 = vld [vmem:[#allocation2 + $0x110] sm:$0xff]
    %v220 = vld [vmem:[#allocation2 + $0x118] sm:$0xff]
    %v221 = vld [vmem:[#allocation2 + $0x120] sm:$0x1]
    %v222 = vlaneseq
    %v223 = vshrl.u32 %v222, 7
    %v224 = vsub.s32 0, %v223
    %v225 = vrot.slane %v221, %v224
    %226 = vmatprep.subr.mxu0 0.0
    %227 = vmatpush1.msra.mxu0 %v220
    %228 = vmatprep.subr.mxu0 0.0
    %229 = vmatpush1.msra.mxu0 %v219
    %230 = vmatprep.subr.mxu0 0.0
    %231 = vmatpush1.msra.mxu0 %v218
    %232 = vmatprep.subr.mxu0 0.0
    %233 = vmatpush1.msra.mxu0 %v217
    %234 = vmatprep.subr.mxu0 0.0
    %235 = vmatpush1.msra.mxu0 %v216
    %236 = vmatprep.subr.mxu0 0.0
    %237 = vmatpush1.msra.mxu0 %v215
    %238 = vmatprep.subr.mxu0 0.0
    %239 = vmatpush1.msra.mxu0 %v214
    %240 = vmatprep.subr.mxu0 0.0
    %241 = vmatpush1.msra.mxu0 %v213
    %242 = vmatprep.subr.mxu0 0.0
    %243 = vmatpush1.msra.mxu0 %v212
    %244 = vmatprep.subr.mxu0 0.0
    %245 = vmatpush1.msra.mxu0 %v211
    %246 = vmatprep.subr.mxu0 0.0
    %247 = vmatpush1.msra.mxu0 %v210
    %248 = vmatprep.subr.mxu0 0.0
    %249 = vmatpush1.msra.mxu0 %v209
    %250 = vmatprep.subr.mxu0 0.0
    %251 = vmatpush1.msra.mxu0 %v208
    %252 = vmatprep.subr.mxu0 0.0
    %253 = vmatpush1.msra.mxu0 %v207
    %254 = vmatprep.subr.mxu0 0.0
    %255 = vmatpush1.msra.mxu0 %v206
    %256 = vmatprep.subr.mxu0 0.0
    %257 = vmatpush1.msra.mxu0 %v205
    %258 = vmatprep.subr.mxu0 0.0
    %259 = vmatpush2.msra.mxu0 0.0
    %260 = vmatprep.subr.mxu0 0.0
    %261 = vmatpush2.msra.mxu0 0.0
    %262 = vmatprep.subr.mxu0 0.0
    %263 = vmatpush2.msra.mxu0 0.0
    %264 = vmatprep.subr.mxu0 0.0
    %265 = vmatpush2.msra.mxu0 0.0
    %266 = vmatprep.subr.mxu0 0.0
    %267 = vmatpush2.msra.mxu0 0.0
    %268 = vmatprep.subr.mxu0 0.0
    %269 = vmatpush2.msra.mxu0 0.0
    %270 = vmatprep.subr.mxu0 0.0
    %271 = vmatpush2.msra.mxu0 0.0
    %272 = vmatprep.subr.mxu0 0.0
    %273 = vmatpush2.msra.mxu0 0.0
    %274 = vmatprep.subr.mxu0 0.0
    %275 = vmatpush2.msra.mxu0 0.0
    %276 = vmatprep.subr.mxu0 0.0
    %277 = vmatpush2.msra.mxu0 0.0
    %278 = vmatprep.subr.mxu0 0.0
    %279 = vmatpush2.msra.mxu0 0.0
    %280 = vmatprep.subr.mxu0 0.0
    %281 = vmatpush2.msra.mxu0 0.0
    %282 = vmatprep.subr.mxu0 0.0
    %283 = vmatpush2.msra.mxu0 0.0
    %284 = vmatprep.subr.mxu0 0.0
    %285 = vmatpush2.msra.mxu0 0.0
    %286 = vmatprep.subr.mxu0 0.0
    %287 = vmatpush2.msra.mxu0 0.0
    %288 = vmatprep.subr.mxu0 0.0
    %289 = vmatpush2.msra.mxu0 0.0
    %290 = vmatprep.mubr.f32.mxu0 0.0
    %291 = vmatmul.mubr.f32.gmra.mxu0 %v204
    %v292 = vpop.f32.mrf.mxu0
    %v293 = vadd.f32 %v225, %v292
    %v294 = vpop.f32.mrf.mxu0
    %295 = vdwg.mxu0
    %v296 = vmax.f32 %v293, -20.0
    %v297 = vmin.f32 %v296, 2.0
    %v298 = vmul.f32 %v297, 1.442695
    %v299 = vpow.pop %v298
    %v300 = vld [vmem:[%s2] sm:$0xff]
    %302 = vrot.lane.b32.xlu0 %v300, 4
    %v303 = vpop.permute.xlu0 %302
    %v305 = vmul.f32 %v299, %v303
    %307 = vrot.lane.b32.xlu0 %v305, 124
    %v308 = vpop.permute.xlu0 %307
    %v310 = vadd.f32 %v293, %v308
    %v311 = vtanh.pop %v310
    %v312 = vmul.f32 %v300, -0.5
    %v313 = vmul.f32 %v312, %v300
    %315 = vrot.lane.b32.xlu0 %v297, 124
    %v316 = vpop.permute.xlu0 %315
    %v318 = vsub.f32 %v313, %v316
    %v319 = vsub.f32 %v318, 0.9189385
    %v320 = vmul.f32 %v310, -2.0
    %v321 = vmax.f32 %v320, 0.0
    %v322 = vand.u32 2147483647, %v320
    %v323 = vsub.f32 0.0, %v322
    %v324 = vmul.f32 %v323, 1.442695
    %v325 = vpow.pop %v324
    %v326 = vadd.f32 %v325, 1.0
    %v327 = vlog2.pop %v326
    %v328 = vmul.f32 %v327, 0.6931472
    %v329 = vmul.f32 -0.5, %v325
    %v330 = vadd.f32 %v329, 1.0
    %v331 = vmul.f32 %v330, %v325
    %v332 = vand.u32 2147483647, %v325
    %vm333 = vcmp.lt.f32.partialorder %v332, 0.0004427343
    %v334 = vsel %vm333, %v331, %v328
    %v335 = vadd.f32 %v321, %v334
    %v336 = vsub.f32 0.6931472, %v310
    %v337 = vsub.f32 %v336, %v335
    %v338 = vmul.f32 %v337, 2.0
    %v339 = vsub.f32 %v319, %v338
    %vm340 = vcmask 31744
    %v341 = vsel %vm340, %v339, 0.0
    %342 = vadd.xlane.f32.xlu0 %v341
    %v343 = vpop.xlane.xlu0 %342
    %344 = vst.msk [vmem:[%s3] sm:$0xff] %vm340, %v311
    %vm345 = vcmask 7168
    %346 = vst.msk [vmem:[%s4] sm:$0xff] %vm345, %v343
    // Predicated region
    $region18: #{actor_bs_forward.1} parent=1 // pred_check
      _
    $region19: #{actor_bs_forward.1} parent=1 // pred_check_branch
      %348 = sbr.rel (0) target = $region21
    $region20: #{actor_bs_forward.1} parent=1 // pred_region
      _
    $region21: #{actor_bs_forward.1} parent=1 // pred_fallthru
      _
    // Predicated region
    $region22: #{actor_bs_forward.1} parent=1 // pred_check
      _
    $region23: #{actor_bs_forward.1} parent=1 // pred_check_branch
      %350 = sbr.rel (0) target = $region25
    $region24: #{actor_bs_forward.1} parent=1 // pred_region
      _
    $region25: #{actor_bs_forward.1} parent=1 // pred_fallthru
      _
    // Predicated region
    $region26: #{actor_bs_forward.1} parent=1 // pred_check
      _
    $region27: #{actor_bs_forward.1} parent=1 // pred_check_branch
      %352 = sbr.rel (0) target = $region29
    $region28: #{actor_bs_forward.1} parent=1 // pred_region
      _
    $region29: #{actor_bs_forward.1} parent=1 // pred_fallthru
      _
    // Predicated region
    $region30: #{actor_bs_forward.1} parent=1 // pred_check
      _
    $region31: #{actor_bs_forward.1} parent=1 // pred_check_branch
      %354 = sbr.rel (0) target = $region33
    $region32: #{actor_bs_forward.1} parent=1 // pred_region
      _
    $region33: #{actor_bs_forward.1} parent=1 // pred_fallthru
      _
    %355 = vsyncpa [#allocation3], 1

</llo_original>
